<compile_context>
chip_gen: v7x
topology: tpu7x:2x2x1
jax: 0.10.0
libtpu: 0.0.40
codegen_flags: <defaults>
</compile_context>

<pallas_src>
import jax
import jax.numpy as jnp
from jax.experimental import pallas as pl
from jax.experimental.pallas import tpu as pltpu

HIDDEN = 64
CONV_OUT = 16
FC1_OUT = 32
FC2_OUT = 1
SLAB_COLS = 3 * HIDDEN  # 192: [i | g | o] gate columns


def _slab_layout(input_dim):
    """Row offsets of each sub-matrix inside the packed weight slab."""
    r_wg = 0                                   # gate weights, rows [0, D)
    r_bg = input_dim                           # gate bias row
    r_conv = (input_dim + 1 + 7) // 8 * 8      # conv block, sublane aligned
    r_fc1 = r_conv + HIDDEN                    # fc1 block
    r_tail = r_fc1 + CONV_OUT                  # biases + fc2 row
    rows = (r_tail + 4 + 7) // 8 * 8
    return r_wg, r_bg, r_conv, r_fc1, r_tail, rows


def lstm_cnn_kernel(x_ref, w_ref, out_ref):
    """Fused LSTM(T=1) -> Conv1d(mid tap) -> fc1 -> fc2.

    x_ref:  (B, D)           raw input (no ones column; bias added in-kernel).
    w_ref:  (R, 192) slab:
        rows [0, D)          fused gate weights [W_i | W_g | W_o]   (D, 192)
        row  D               fused gate bias (b_ih + b_hh)          (1, 192)
        rows [r_conv, +64)   Conv1d middle tap, transposed, cols 0:16
        rows [r_fc1, +16)    fc1 weight, transposed, cols 0:32
        row  r_tail + 0      b_conv (cols 0:16)
        row  r_tail + 1      b_fc1  (cols 0:32)
        row  r_tail + 2      fc2 weight row (cols 0:32)
        row  r_tail + 3      b_fc2  (col 0)
    """
    _, D = x_ref.shape
    r_wg, r_bg, r_conv, r_fc1, r_tail, _ = _slab_layout(D)

    x = x_ref[...]

    # ---- LSTM step (T = 1, h0 = c0 = 0); forget gate dropped (c0 = 0) ----
    # Single (B, D) @ (D, 192) MXU push for all three live gates.
    gates = (jnp.dot(x, w_ref[r_wg:r_wg + D, :], preferred_element_type=jnp.float32)
             + w_ref[r_bg:r_bg + 1, :])                               # (B, 192)
    i_g = jax.nn.sigmoid(gates[:, 0:HIDDEN])
    g_g = jnp.tanh(gates[:, HIDDEN:2 * HIDDEN])
    o_g = jax.nn.sigmoid(gates[:, 2 * HIDDEN:3 * HIDDEN])
    h1 = o_g * jnp.tanh(i_g * g_g)                                    # (B, 64)

    # ---- Conv1d(64->16, k=3, pad=1) on length-1 sequence == middle-tap matmul ----
    conv = jnp.dot(h1, w_ref[r_conv:r_conv + HIDDEN, 0:CONV_OUT],
                   preferred_element_type=jnp.float32)
    conv = jnp.maximum(conv + w_ref[r_tail:r_tail + 1, 0:CONV_OUT], 0.0)   # (B, 16)

    # ---- fc1 + relu ----
    fc1 = jnp.dot(conv, w_ref[r_fc1:r_fc1 + CONV_OUT, 0:FC1_OUT],
                  preferred_element_type=jnp.float32)
    fc1 = jnp.maximum(fc1 + w_ref[r_tail + 1:r_tail + 2, 0:FC1_OUT], 0.0)  # (B, 32)

    # ---- fc2 (N = 1): VPU multiply + lane reduction instead of an MXU round-trip ----
    out_ref[...] = (jnp.sum(fc1 * w_ref[r_tail + 2:r_tail + 3, 0:FC1_OUT],
                            axis=-1, keepdims=True)
                    + w_ref[r_tail + 3:r_tail + 4, 0:1])


def init_params(key, input_dim):
    """Deterministic PyTorch-style uniform init (same shapes as the nn.Module)."""
    ks = jax.random.split(key, 10)

    def u(k, shape, fan_in):
        bound = 1.0 / jnp.sqrt(jnp.float32(fan_in))
        return jax.random.uniform(k, shape, jnp.float32, -bound, bound)

    return dict(
        w_ih=u(ks[0], (4 * HIDDEN, input_dim), HIDDEN),   # nn.LSTM weight_ih_l0
        w_hh=u(ks[1], (4 * HIDDEN, HIDDEN), HIDDEN),      # unused (h0 = 0), kept for fidelity
        b_ih=u(ks[2], (4 * HIDDEN,), HIDDEN),
        b_hh=u(ks[3], (4 * HIDDEN,), HIDDEN),
        w_conv=u(ks[4], (CONV_OUT, HIDDEN, 3), HIDDEN * 3),
        b_conv=u(ks[5], (CONV_OUT,), HIDDEN * 3),
        w_fc1=u(ks[6], (FC1_OUT, CONV_OUT), CONV_OUT),
        b_fc1=u(ks[7], (FC1_OUT,), CONV_OUT),
        w_fc2=u(ks[8], (FC2_OUT, FC1_OUT), FC1_OUT),
        b_fc2=u(ks[9], (FC2_OUT,), FC1_OUT),
    )


def pack_params(params):
    """One-time packing of every weight/bias into a single pre-padded f32 slab.

    Done once at init and cached by the caller; the per-call path never repacks.
    The dead forget gate and the never-exercised W_hh are not shipped.
    """
    D = params["w_ih"].shape[1]
    r_wg, r_bg, r_conv, r_fc1, r_tail, rows = _slab_layout(D)

    b_lstm = params["b_ih"] + params["b_hh"]                           # (256,)

    def gate_w(idx):   # (D, 64)
        return params["w_ih"][idx * HIDDEN:(idx + 1) * HIDDEN, :].T

    def gate_b(idx):   # (64,)
        return b_lstm[idx * HIDDEN:(idx + 1) * HIDDEN]

    # PyTorch gate order is [i, f, g, o]; the forget gate (idx 1) is dead (c0 = 0).
    wg = jnp.concatenate([gate_w(0), gate_w(2), gate_w(3)], axis=1)    # (D, 192)
    bg = jnp.concatenate([gate_b(0), gate_b(2), gate_b(3)])            # (192,)

    slab = jnp.zeros((rows, SLAB_COLS), jnp.float32)
    slab = slab.at[r_wg:r_wg + D, :].set(wg)
    slab = slab.at[r_bg, :].set(bg)
    slab = slab.at[r_conv:r_conv + HIDDEN, 0:CONV_OUT].set(params["w_conv"][:, :, 1].T)
    slab = slab.at[r_fc1:r_fc1 + CONV_OUT, 0:FC1_OUT].set(params["w_fc1"].T)
    slab = slab.at[r_tail, 0:CONV_OUT].set(params["b_conv"])
    slab = slab.at[r_tail + 1, 0:FC1_OUT].set(params["b_fc1"])
    slab = slab.at[r_tail + 2, 0:FC1_OUT].set(params["w_fc2"][0])
    slab = slab.at[r_tail + 3, 0].set(params["b_fc2"][0])
    return slab


@jax.jit
def lstm_cnn_forward(x, w_slab):
    # TODO(synk): only T == 1 is supported (the PyTorch module itself requires it
    # because it flattens the conv output straight into Linear(16, 32)); the
    # recurrent W_hh path is therefore never exercised.
    B, T, D = x.shape
    assert T == 1, "forward only valid for seq_len == 1"
    x2 = x.reshape(B, D).astype(jnp.float32)
    vmem_spec = pl.BlockSpec(memory_space=pltpu.MemorySpace.VMEM)
    return pl.pallas_call(
        lstm_cnn_kernel,
        out_shape=jax.ShapeDtypeStruct((B, FC2_OUT), jnp.float32),
        in_specs=[vmem_spec, vmem_spec],
        out_specs=vmem_spec,
    )(x2, w_slab)


def reference_forward(x, params):
    """Pure-JAX reference mirroring the PyTorch semantics (T == 1)."""
    B, T, D = x.shape
    x2 = x.reshape(B, D)
    gates = x2 @ params["w_ih"].T + params["b_ih"] + params["b_hh"]
    i = jax.nn.sigmoid(gates[:, 0 * HIDDEN:1 * HIDDEN])
    g = jnp.tanh(gates[:, 2 * HIDDEN:3 * HIDDEN])
    o = jax.nn.sigmoid(gates[:, 3 * HIDDEN:4 * HIDDEN])
    h = o * jnp.tanh(i * g)
    conv = jnp.maximum(h @ params["w_conv"][:, :, 1].T + params["b_conv"], 0.0)
    fc1 = jnp.maximum(conv @ params["w_fc1"].T + params["b_fc1"], 0.0)
    return fc1 @ params["w_fc2"].T + params["b_fc2"]


if __name__ == "__main__":
    key = jax.random.PRNGKey(0)
    kx, kp = jax.random.split(key)

    B, T, INPUT_DIM = 32, 1, 3
    x = jax.random.uniform(kx, (B, T, INPUT_DIM), jnp.float32)
    params = init_params(kp, INPUT_DIM)

    # Pack once at init; reused for every forward call.
    w_slab = jax.block_until_ready(pack_params(params))

    out = lstm_cnn_forward(x, w_slab)
    out = jax.block_until_ready(out)

    ref = reference_forward(x, params)
    assert out.shape == (B, FC2_OUT)
    assert jnp.allclose(out, ref, atol=1e-5, rtol=1e-5)

    print("KERNEL_OK")
</pallas_src>

<mosaic_0001>
module attributes {stable_mosaic.version = 11 : i64} {
  func.func @lstm_cnn_kernel(%arg0: memref<32x3xf32, #tpu.memory_space<vmem>>, %arg1: memref<96x192xf32, #tpu.memory_space<vmem>>, %arg2: memref<32x1xf32, #tpu.memory_space<vmem>>) attributes {dimension_semantics = [], scalar_prefetch = 0 : i64, scratch_operands = 0 : i64, tpu.core_type = #tpu.core_type<tc>} {
    %c0 = arith.constant 0 : index
    %c0_0 = arith.constant 0 : index
    %0 = vector.load %arg0[%c0, %c0_0] : memref<32x3xf32, #tpu.memory_space<vmem>>, vector<32x3xf32>
    %c0_1 = arith.constant 0 : index
    %c0_2 = arith.constant 0 : index
    %1 = vector.load %arg1[%c0_1, %c0_2] : memref<96x192xf32, #tpu.memory_space<vmem>>, vector<3x192xf32>
    %cst = arith.constant dense<0.000000e+00> : vector<32x192xf32>
    %2 = tpu.matmul %0, %1, %cst {dimension_numbers = #tpu.dot_dimension_numbers<[1], [0], [0], [1], [0, 0, 1, 1], [], []>} : vector<32x3xf32>, vector<3x192xf32>, vector<32x192xf32> -> vector<32x192xf32>
    %c3 = arith.constant 3 : index
    %c0_3 = arith.constant 0 : index
    %3 = vector.load %arg1[%c3, %c0_3] : memref<96x192xf32, #tpu.memory_space<vmem>>, vector<1x192xf32>
    %4 = vector.broadcast %3 : vector<1x192xf32> to vector<32x192xf32>
    %5 = arith.addf %2, %4 : vector<32x192xf32>
    %6 = vector.extract_strided_slice %5 {offsets = [0, 0], sizes = [32, 64], strides = [1, 1]} : vector<32x192xf32> to vector<32x64xf32>
    %7 = arith.negf %6 : vector<32x64xf32>
    %8 = math.exp %7 : vector<32x64xf32>
    %cst_4 = arith.constant 1.000000e+00 : f32
    %9 = vector.broadcast %cst_4 : f32 to vector<32x64xf32>
    %10 = arith.addf %9, %8 : vector<32x64xf32>
    %11 = arith.divf %9, %10 : vector<32x64xf32>
    %12 = vector.extract_strided_slice %5 {offsets = [0, 64], sizes = [32, 64], strides = [1, 1]} : vector<32x192xf32> to vector<32x64xf32>
    %13 = math.tanh %12 : vector<32x64xf32>
    %14 = vector.extract_strided_slice %5 {offsets = [0, 128], sizes = [32, 64], strides = [1, 1]} : vector<32x192xf32> to vector<32x64xf32>
    %15 = arith.negf %14 : vector<32x64xf32>
    %16 = math.exp %15 : vector<32x64xf32>
    %cst_5 = arith.constant 1.000000e+00 : f32
    %17 = vector.broadcast %cst_5 : f32 to vector<32x64xf32>
    %18 = arith.addf %17, %16 : vector<32x64xf32>
    %19 = arith.divf %17, %18 : vector<32x64xf32>
    %20 = arith.mulf %11, %13 : vector<32x64xf32>
    %21 = math.tanh %20 : vector<32x64xf32>
    %22 = arith.mulf %19, %21 : vector<32x64xf32>
    %c8 = arith.constant 8 : index
    %c0_6 = arith.constant 0 : index
    %23 = vector.load %arg1[%c8, %c0_6] : memref<96x192xf32, #tpu.memory_space<vmem>>, vector<64x16xf32>
    %cst_7 = arith.constant dense<0.000000e+00> : vector<32x16xf32>
    %24 = tpu.matmul %22, %23, %cst_7 {dimension_numbers = #tpu.dot_dimension_numbers<[1], [0], [0], [1], [0, 0, 1, 1], [], []>} : vector<32x64xf32>, vector<64x16xf32>, vector<32x16xf32> -> vector<32x16xf32>
    %c88 = arith.constant 88 : index
    %c0_8 = arith.constant 0 : index
    %25 = vector.load %arg1[%c88, %c0_8] : memref<96x192xf32, #tpu.memory_space<vmem>>, vector<1x16xf32>
    %26 = vector.broadcast %25 : vector<1x16xf32> to vector<32x16xf32>
    %27 = arith.addf %24, %26 : vector<32x16xf32>
    %cst_9 = arith.constant 0.000000e+00 : f32
    %28 = vector.broadcast %cst_9 : f32 to vector<32x16xf32>
    %29 = arith.maximumf %27, %28 : vector<32x16xf32>
    %c72 = arith.constant 72 : index
    %c0_10 = arith.constant 0 : index
    %30 = vector.load %arg1[%c72, %c0_10] : memref<96x192xf32, #tpu.memory_space<vmem>>, vector<16x32xf32>
    %cst_11 = arith.constant dense<0.000000e+00> : vector<32x32xf32>
    %31 = tpu.matmul %29, %30, %cst_11 {dimension_numbers = #tpu.dot_dimension_numbers<[1], [0], [0], [1], [0, 0, 1, 1], [], []>} : vector<32x16xf32>, vector<16x32xf32>, vector<32x32xf32> -> vector<32x32xf32>
    %c89 = arith.constant 89 : index
    %c0_12 = arith.constant 0 : index
    %32 = vector.load %arg1[%c89, %c0_12] : memref<96x192xf32, #tpu.memory_space<vmem>>, vector<1x32xf32>
    %33 = vector.broadcast %32 : vector<1x32xf32> to vector<32x32xf32>
    %34 = arith.addf %31, %33 : vector<32x32xf32>
    %cst_13 = arith.constant 0.000000e+00 : f32
    %35 = vector.broadcast %cst_13 : f32 to vector<32x32xf32>
    %36 = arith.maximumf %34, %35 : vector<32x32xf32>
    %c90 = arith.constant 90 : index
    %c0_14 = arith.constant 0 : index
    %37 = vector.load %arg1[%c90, %c0_14] : memref<96x192xf32, #tpu.memory_space<vmem>>, vector<1x32xf32>
    %38 = vector.broadcast %37 : vector<1x32xf32> to vector<32x32xf32>
    %39 = arith.mulf %36, %38 : vector<32x32xf32>
    %cst_15 = arith.constant dense<0.000000e+00> : vector<32xf32>
    %40 = vector.multi_reduction <add>, %39, %cst_15 [1] : vector<32x32xf32> to vector<32xf32>
    %41 = vector.shape_cast %40 : vector<32xf32> to vector<32x1xf32>
    %c91 = arith.constant 91 : index
    %c0_16 = arith.constant 0 : index
    %42 = vector.load %arg1[%c91, %c0_16] : memref<96x192xf32, #tpu.memory_space<vmem>>, vector<1x1xf32>
    %43 = vector.broadcast %42 : vector<1x1xf32> to vector<32x1xf32>
    %44 = arith.addf %41, %43 : vector<32x1xf32>
    %c0_17 = arith.constant 0 : index
    %c0_18 = arith.constant 0 : index
    %45 = vector.load %arg2[%c0_17, %c0_18] : memref<32x1xf32, #tpu.memory_space<vmem>>, vector<32x1xf32>
    tpu.vector_store %arg2[%c0_17, %c0_18], %44 {strides = array<i32>} : memref<32x1xf32, #tpu.memory_space<vmem>>, vector<32x1xf32>,
    return
  }
}

</mosaic_0001>

<llo_original>
// kernel: lstm_cnn_forward.1
$region0: #{lstm_cnn_forward.1}
  #allocation0 [shape = 'u32[]', space=smem, size = 0x4, offset = 0x4, fixed_abs, tag = 'smem constant byte address 0x4 - core index']
  #allocation1 [shape = 'u32[144,128]{1,0:T(1,128)}', space=vmem, size = 0x12000, scoped, tag = 'internal scratch']
  %s0 = inlined_call_operand.vmem [shape: f32[32,3], index: 0, kind: input, shape index: {}]
  %s1 = inlined_call_operand.hbm [shape: f32[96,192], index: 1, kind: input, shape index: {}]
  %s2 = inlined_call_operand.vmem [shape: f32[32,1], index: 2, kind: output, shape index: {}]
  %s3 = sld [smem:[#allocation0]]
  $region22: #{lstm_cnn_forward.1} parent=0
    _
  %s5 = ssub.s32 1, %s3
  %s6 = scalar_select 0, %s5, %s3
  $region1: #{lstm_cnn_forward.1} parent=0
    #allocation2 [shape = 'u8[98304]{0}', space=vmem, size = 0x18000, scoped, tag = 'input window, operand 1, single buffered']
    #allocation3 [shape = 's32[1]{0}', space=sflag, size = 0x4, scoped, tag = 'scoped memory for lstm_cnn_forward.1']
    %7 = vsyncpa [#allocation3], 0
    // Predicated region
    $region2: #{lstm_cnn_forward.1} parent=1 // pred_check
      _
    $region3: #{lstm_cnn_forward.1} parent=1 // pred_check_branch
      %9 = sbr.rel (0) target = $region5
    $region4: #{lstm_cnn_forward.1} parent=1 // pred_region
      _
    $region5: #{lstm_cnn_forward.1} parent=1 // pred_fallthru
      _
    // Predicated region
    $region6: #{lstm_cnn_forward.1} parent=1 // pred_check
      _
    $region7: #{lstm_cnn_forward.1} parent=1 // pred_check_branch
      %11 = sbr.rel (0) target = $region9
    $region8: #{lstm_cnn_forward.1} parent=1 // pred_region
      %s13 = ssub.s32 3072, 3072
      %14 = vsyncadd [#allocation3], %s13
      %s15 = sshll.u32 [#allocation2], 4
      %s16 = int_to_ptr.vmem [resolvable:$true] %s15
      %21 = dma.hbm_to_vmem [thread:$0]  %s1, 3072, %s16, [#allocation3], 256, 256, 16
    $region9: #{lstm_cnn_forward.1} parent=1 // pred_fallthru
      _
    // Predicated region
    $region10: #{lstm_cnn_forward.1} parent=1 // pred_check
      _
    $region11: #{lstm_cnn_forward.1} parent=1 // pred_check_branch
      %23 = sbr.rel (0) target = $region13
    $region12: #{lstm_cnn_forward.1} parent=1 // pred_region
      %24 = dma.done [#allocation3], 3072
    $region13: #{lstm_cnn_forward.1} parent=1 // pred_fallthru
      _
    %v25 = vld [vmem:[%s0] sm:$0xff]
    %v26 = vld [vmem:[%s0 + $0x8] sm:$0xff]
    %v27 = vld [vmem:[%s0 + $0x10] sm:$0xff]
    %v28 = vld [vmem:[%s0 + $0x18] sm:$0xff]
    %v29 = vld [vmem:[#allocation2] sm:$0x7]
    %v30 = vld [vmem:[#allocation2 + $0x8] sm:$0x7]
    %s31 = scalar_lea.vmem [#allocation2], 3
    %v32 = vld [vmem:[%s31] ss:$8 sm:$0x3]
    %v34 = vlaneseq
    %v35 = vshrl.u32 %v34, 7
    %v36 = vsub.s32 0, %v35
    %v37 = vrot.slane %v32, %v36
    %v38 = vlaneseq
    %v39 = vshrl.u32 %v38, 7
    %v40 = vsub.s32 1, %v39
    %v41 = vrot.slane %v32, %v40
    %vm44 = vcmask 23552
    %v46 = vsel %vm44, %v25, 0
    %v49 = vsel %vm44, %v26, 0
    %v52 = vsel %vm44, %v27, 0
    %v55 = vsel %vm44, %v28, 0
    %vm57 = vcmask 1042432
    %v59 = vsel %vm57, %v29, 0
    %v62 = vsel %vm57, %v30, 0
    %64 = vmatprep.subr.mxu0 %v62
    %65 = vmatpush1.msra.mxu0 %v59
    %66 = vmatprep.subr.mxu0 0.0
    %67 = vmatpush1.msra.mxu0 0.0
    %68 = vmatprep.subr.mxu0 0.0
    %69 = vmatpush1.msra.mxu0 0.0
    %70 = vmatprep.subr.mxu0 0.0
    %71 = vmatpush1.msra.mxu0 0.0
    %72 = vmatprep.subr.mxu0 0.0
    %73 = vmatpush1.msra.mxu0 0.0
    %74 = vmatprep.subr.mxu0 0.0
    %75 = vmatpush1.msra.mxu0 0.0
    %76 = vmatprep.subr.mxu0 0.0
    %77 = vmatpush1.msra.mxu0 0.0
    %78 = vmatprep.subr.mxu0 0.0
    %79 = vmatpush1.msra.mxu0 0.0
    %80 = vmatprep.subr.mxu0 0.0
    %81 = vmatpush1.msra.mxu0 0.0
    %82 = vmatprep.subr.mxu0 0.0
    %83 = vmatpush1.msra.mxu0 0.0
    %84 = vmatprep.subr.mxu0 0.0
    %85 = vmatpush1.msra.mxu0 0.0
    %86 = vmatprep.subr.mxu0 0.0
    %87 = vmatpush1.msra.mxu0 0.0
    %88 = vmatprep.subr.mxu0 0.0
    %89 = vmatpush1.msra.mxu0 0.0
    %90 = vmatprep.subr.mxu0 0.0
    %91 = vmatpush1.msra.mxu0 0.0
    %92 = vmatprep.subr.mxu0 0.0
    %93 = vmatpush1.msra.mxu0 0.0
    %94 = vmatprep.subr.mxu0 0.0
    %95 = vmatpush1.msra.mxu0 0.0
    %96 = vmatprep.subr.mxu0 0.0
    %97 = vmatpush1.msra.mxu0 0.0
    %98 = vmatprep.subr.mxu0 0.0
    %99 = vmatpush1.msra.mxu0 0.0
    %100 = vmatprep.subr.mxu0 0.0
    %101 = vmatpush1.msra.mxu0 0.0
    %102 = vmatprep.subr.mxu0 0.0
    %103 = vmatpush1.msra.mxu0 0.0
    %104 = vmatprep.subr.mxu0 0.0
    %105 = vmatpush1.msra.mxu0 0.0
    %106 = vmatprep.subr.mxu0 0.0
    %107 = vmatpush1.msra.mxu0 0.0
    %108 = vmatprep.subr.mxu0 0.0
    %109 = vmatpush1.msra.mxu0 0.0
    %110 = vmatprep.subr.mxu0 0.0
    %111 = vmatpush1.msra.mxu0 0.0
    %112 = vmatprep.subr.mxu0 0.0
    %113 = vmatpush1.msra.mxu0 0.0
    %114 = vmatprep.subr.mxu0 0.0
    %115 = vmatpush1.msra.mxu0 0.0
    %116 = vmatprep.subr.mxu0 0.0
    %117 = vmatpush1.msra.mxu0 0.0
    %118 = vmatprep.subr.mxu0 0.0
    %119 = vmatpush1.msra.mxu0 0.0
    %120 = vmatprep.subr.mxu0 0.0
    %121 = vmatpush1.msra.mxu0 0.0
    %122 = vmatprep.subr.mxu0 0.0
    %123 = vmatpush1.msra.mxu0 0.0
    %124 = vmatprep.subr.mxu0 0.0
    %125 = vmatpush1.msra.mxu0 0.0
    %126 = vmatprep.subr.mxu0 0.0
    %127 = vmatpush1.msra.mxu0 0.0
    %128 = vmatprep.mubr.f32.mxu0 0.0
    %129 = vmatmul.mubr.f32.gmra.mrb[0].mxu0 %v46
    %v130 = vpop.f32.mrb[0].mxu0
    %v131 = vadd.f32 %v37, %v130
    %v132 = vpop.f32.mrb[0].mxu0
    %v133 = vadd.f32 %v41, %v132
    %134 = vmatprep.mubr.f32.mxu0 0.0
    %135 = vmatmul.mubr.f32.gmra.mrb[0].mxu0 %v49
    %v136 = vpop.f32.mrb[0].mxu0
    %v137 = vadd.f32 %v37, %v136
    %v138 = vpop.f32.mrb[0].mxu0
    %v139 = vadd.f32 %v41, %v138
    %140 = vmatprep.mubr.f32.mxu0 0.0
    %141 = vmatmul.mubr.f32.gmra.mrb[0].mxu0 %v52
    %v142 = vpop.f32.mrb[0].mxu0
    %v143 = vadd.f32 %v37, %v142
    %v144 = vpop.f32.mrb[0].mxu0
    %v145 = vadd.f32 %v41, %v144
    %146 = vmatprep.mubr.f32.mxu0 0.0
    %147 = vmatmul.mubr.f32.gmra.mrb[0].mxu0 %v55
    %v148 = vpop.f32.mrb[0].mxu0
    %v149 = vadd.f32 %v37, %v148
    %v150 = vpop.f32.mrb[0].mxu0
    %v151 = vadd.f32 %v41, %v150
    %152 = vdwg.mxu0
    %v153 = vxor.u32 %v131, 2147483648
    %v154 = vxor.u32 %v137, 2147483648
    %v155 = vxor.u32 %v143, 2147483648
    %v156 = vxor.u32 %v149, 2147483648
    %v157 = vmul.f32 %v153, 1.442695
    %v158 = vpow.pop %v157
    %v159 = vmul.f32 %v154, 1.442695
    %v160 = vpow.pop %v159
    %v161 = vmul.f32 %v155, 1.442695
    %v162 = vpow.pop %v161
    %v163 = vmul.f32 %v156, 1.442695
    %v164 = vpow.pop %v163
    %v165 = vadd.f32 %v158, 1.0
    %v166 = vadd.f32 %v160, 1.0
    %v167 = vadd.f32 %v162, 1.0
    %v168 = vadd.f32 %v164, 1.0
    %v169 = vrcp.pop %v165
    %v170 = vmul.f32 1.0, %v169
    %v171 = vrcp.pop %v166
    %v172 = vmul.f32 1.0, %v171
    %v173 = vrcp.pop %v167
    %v174 = vmul.f32 1.0, %v173
    %v175 = vrcp.pop %v168
    %v176 = vmul.f32 1.0, %v175
    %v177 = vtanh.pop %v131
    %v178 = vtanh.pop %v137
    %v179 = vtanh.pop %v143
    %v180 = vtanh.pop %v149
    %v181 = vxor.u32 %v133, 2147483648
    %v182 = vxor.u32 %v139, 2147483648
    %v183 = vxor.u32 %v145, 2147483648
    %v184 = vxor.u32 %v151, 2147483648
    %v185 = vmul.f32 %v181, 1.442695
    %v186 = vpow.pop %v185
    %v187 = vmul.f32 %v182, 1.442695
    %v188 = vpow.pop %v187
    %v189 = vmul.f32 %v183, 1.442695
    %v190 = vpow.pop %v189
    %v191 = vmul.f32 %v184, 1.442695
    %v192 = vpow.pop %v191
    %v193 = vadd.f32 %v186, 1.0
    %v194 = vadd.f32 %v188, 1.0
    %v195 = vadd.f32 %v190, 1.0
    %v196 = vadd.f32 %v192, 1.0
    %v197 = vrcp.pop %v193
    %v198 = vmul.f32 1.0, %v197
    %v199 = vrcp.pop %v194
    %v200 = vmul.f32 1.0, %v199
    %v201 = vrcp.pop %v195
    %v202 = vmul.f32 1.0, %v201
    %v203 = vrcp.pop %v196
    %v204 = vmul.f32 1.0, %v203
    %209 = vrot.lane.b32.xlu0 %v177, 64
    %v210 = vpop.permute.xlu0 %209
    %211 = vrot.lane.b32.xlu0 %v178, 64
    %v212 = vpop.permute.xlu0 %211
    %213 = vrot.lane.b32.xlu0 %v179, 64
    %v214 = vpop.permute.xlu0 %213
    %215 = vrot.lane.b32.xlu0 %v180, 64
    %v216 = vpop.permute.xlu0 %215
    %v221 = vmul.f32 %v170, %v210
    %v222 = vmul.f32 %v172, %v212
    %v223 = vmul.f32 %v174, %v214
    %v224 = vmul.f32 %v176, %v216
    %v225 = vtanh.pop %v221
    %v226 = vtanh.pop %v222
    %v227 = vtanh.pop %v223
    %v228 = vtanh.pop %v224
    %v229 = vmul.f32 %v198, %v225
    %v230 = vmul.f32 %v200, %v226
    %v231 = vmul.f32 %v202, %v227
    %v232 = vmul.f32 %v204, %v228
    %v233 = vld [vmem:[#allocation2 + $0x10] sm:$0xff]
    %v234 = vld [vmem:[#allocation2 + $0x20] sm:$0xff]
    %v235 = vld [vmem:[#allocation2 + $0x30] sm:$0xff]
    %v236 = vld [vmem:[#allocation2 + $0x40] sm:$0xff]
    %v237 = vld [vmem:[#allocation2 + $0x50] sm:$0xff]
    %v238 = vld [vmem:[#allocation2 + $0x60] sm:$0xff]
    %v239 = vld [vmem:[#allocation2 + $0x70] sm:$0xff]
    %v240 = vld [vmem:[#allocation2 + $0x80] sm:$0xff]
    %v241 = vld [vmem:[#allocation2 + $0xb0] ss:$0 sm:$0xff]
    %vm242 = vcmask 523264
    %v244 = vsel %vm242, %v229, 0
    %v247 = vsel %vm242, %v230, 0
    %v250 = vsel %vm242, %v231, 0
    %v253 = vsel %vm242, %v232, 0
    %255 = vmatprep.subr.mxu0 0.0
    %256 = vmatpush1.msra.mxu0 %v233
    %257 = vmatprep.subr.mxu0 0.0
    %258 = vmatpush1.msra.mxu0 %v234
    %259 = vmatprep.subr.mxu0 0.0
    %260 = vmatpush1.msra.mxu0 %v235
    %261 = vmatprep.subr.mxu0 0.0
    %262 = vmatpush1.msra.mxu0 %v236
    %263 = vmatprep.subr.mxu0 0.0
    %264 = vmatpush1.msra.mxu0 %v237
    %265 = vmatprep.subr.mxu0 0.0
    %266 = vmatpush1.msra.mxu0 %v238
    %267 = vmatprep.subr.mxu0 0.0
    %268 = vmatpush1.msra.mxu0 %v239
    %269 = vmatprep.subr.mxu0 0.0
    %270 = vmatpush1.msra.mxu0 %v240
    %271 = vmatprep.subr.mxu0 0.0
    %272 = vmatpush1.msra.mxu0 0.0
    %273 = vmatprep.subr.mxu0 0.0
    %274 = vmatpush1.msra.mxu0 0.0
    %275 = vmatprep.subr.mxu0 0.0
    %276 = vmatpush1.msra.mxu0 0.0
    %277 = vmatprep.subr.mxu0 0.0
    %278 = vmatpush1.msra.mxu0 0.0
    %279 = vmatprep.subr.mxu0 0.0
    %280 = vmatpush1.msra.mxu0 0.0
    %281 = vmatprep.subr.mxu0 0.0
    %282 = vmatpush1.msra.mxu0 0.0
    %283 = vmatprep.subr.mxu0 0.0
    %284 = vmatpush1.msra.mxu0 0.0
    %285 = vmatprep.subr.mxu0 0.0
    %286 = vmatpush1.msra.mxu0 0.0
    %287 = vmatprep.subr.mxu0 0.0
    %288 = vmatpush1.msra.mxu0 0.0
    %289 = vmatprep.subr.mxu0 0.0
    %290 = vmatpush1.msra.mxu0 0.0
    %291 = vmatprep.subr.mxu0 0.0
    %292 = vmatpush1.msra.mxu0 0.0
    %293 = vmatprep.subr.mxu0 0.0
    %294 = vmatpush1.msra.mxu0 0.0
    %295 = vmatprep.subr.mxu0 0.0
    %296 = vmatpush1.msra.mxu0 0.0
    %297 = vmatprep.subr.mxu0 0.0
    %298 = vmatpush1.msra.mxu0 0.0
    %299 = vmatprep.subr.mxu0 0.0
    %300 = vmatpush1.msra.mxu0 0.0
    %301 = vmatprep.subr.mxu0 0.0
    %302 = vmatpush1.msra.mxu0 0.0
    %303 = vmatprep.subr.mxu0 0.0
    %304 = vmatpush1.msra.mxu0 0.0
    %305 = vmatprep.subr.mxu0 0.0
    %306 = vmatpush1.msra.mxu0 0.0
    %307 = vmatprep.subr.mxu0 0.0
    %308 = vmatpush1.msra.mxu0 0.0
    %309 = vmatprep.subr.mxu0 0.0
    %310 = vmatpush1.msra.mxu0 0.0
    %311 = vmatprep.subr.mxu0 0.0
    %312 = vmatpush1.msra.mxu0 0.0
    %313 = vmatprep.subr.mxu0 0.0
    %314 = vmatpush1.msra.mxu0 0.0
    %315 = vmatprep.subr.mxu0 0.0
    %316 = vmatpush1.msra.mxu0 0.0
    %317 = vmatprep.subr.mxu0 0.0
    %318 = vmatpush1.msra.mxu0 0.0
    %319 = vmatprep.mubr.f32.mxu0 0.0
    %320 = vmatmul.mubr.f32.gmra.mrb[0].mxu0 %v244
    %v321 = vpop.f32.mrb[0].mxu0
    %v322 = vadd.f32 %v241, %v321
    %v323 = vpop.f32.mrb[0].mxu0
    %324 = vmatprep.mubr.f32.mxu0 0.0
    %325 = vmatmul.mubr.f32.gmra.mrb[0].mxu0 %v247
    %v326 = vpop.f32.mrb[0].mxu0
    %v327 = vadd.f32 %v241, %v326
    %v328 = vpop.f32.mrb[0].mxu0
    %329 = vmatprep.mubr.f32.mxu0 0.0
    %330 = vmatmul.mubr.f32.gmra.mrb[0].mxu0 %v250
    %v331 = vpop.f32.mrb[0].mxu0
    %v332 = vadd.f32 %v241, %v331
    %v333 = vpop.f32.mrb[0].mxu0
    %334 = vmatprep.mubr.f32.mxu0 0.0
    %335 = vmatmul.mubr.f32.gmra.mrb[0].mxu0 %v253
    %v336 = vpop.f32.mrb[0].mxu0
    %v337 = vadd.f32 %v241, %v336
    %v338 = vpop.f32.mrb[0].mxu0
    %339 = vdwg.mxu0
    %v340 = vmax.f32 %v322, 0.0
    %v341 = vmax.f32 %v327, 0.0
    %v342 = vmax.f32 %v332, 0.0
    %v343 = vmax.f32 %v337, 0.0
    %v344 = vld [vmem:[#allocation2 + $0x90] sm:$0xff]
    %v345 = vld [vmem:[#allocation2 + $0xa0] sm:$0xff]
    %v346 = vld [vmem:[#allocation2 + $0xb1] ss:$0 sm:$0xff]
    %vm347 = vcmask 130048
    %v349 = vsel %vm347, %v340, 0
    %v352 = vsel %vm347, %v341, 0
    %v355 = vsel %vm347, %v342, 0
    %v358 = vsel %vm347, %v343, 0
    %360 = vmatprep.subr.mxu0 0.0
    %361 = vmatpush1.msra.mxu0 %v344
    %362 = vmatprep.subr.mxu0 0.0
    %363 = vmatpush1.msra.mxu0 %v345
    %364 = vmatprep.subr.mxu0 0.0
    %365 = vmatpush1.msra.mxu0 0.0
    %366 = vmatprep.subr.mxu0 0.0
    %367 = vmatpush1.msra.mxu0 0.0
    %368 = vmatprep.subr.mxu0 0.0
    %369 = vmatpush1.msra.mxu0 0.0
    %370 = vmatprep.subr.mxu0 0.0
    %371 = vmatpush1.msra.mxu0 0.0
    %372 = vmatprep.subr.mxu0 0.0
    %373 = vmatpush1.msra.mxu0 0.0
    %374 = vmatprep.subr.mxu0 0.0
    %375 = vmatpush1.msra.mxu0 0.0
    %376 = vmatprep.subr.mxu0 0.0
    %377 = vmatpush1.msra.mxu0 0.0
    %378 = vmatprep.subr.mxu0 0.0
    %379 = vmatpush1.msra.mxu0 0.0
    %380 = vmatprep.subr.mxu0 0.0
    %381 = vmatpush1.msra.mxu0 0.0
    %382 = vmatprep.subr.mxu0 0.0
    %383 = vmatpush1.msra.mxu0 0.0
    %384 = vmatprep.subr.mxu0 0.0
    %385 = vmatpush1.msra.mxu0 0.0
    %386 = vmatprep.subr.mxu0 0.0
    %387 = vmatpush1.msra.mxu0 0.0
    %388 = vmatprep.subr.mxu0 0.0
    %389 = vmatpush1.msra.mxu0 0.0
    %390 = vmatprep.subr.mxu0 0.0
    %391 = vmatpush1.msra.mxu0 0.0
    %392 = vmatprep.subr.mxu0 0.0
    %393 = vmatpush1.msra.mxu0 0.0
    %394 = vmatprep.subr.mxu0 0.0
    %395 = vmatpush1.msra.mxu0 0.0
    %396 = vmatprep.subr.mxu0 0.0
    %397 = vmatpush1.msra.mxu0 0.0
    %398 = vmatprep.subr.mxu0 0.0
    %399 = vmatpush1.msra.mxu0 0.0
    %400 = vmatprep.subr.mxu0 0.0
    %401 = vmatpush1.msra.mxu0 0.0
    %402 = vmatprep.subr.mxu0 0.0
    %403 = vmatpush1.msra.mxu0 0.0
    %404 = vmatprep.subr.mxu0 0.0
    %405 = vmatpush1.msra.mxu0 0.0
    %406 = vmatprep.subr.mxu0 0.0
    %407 = vmatpush1.msra.mxu0 0.0
    %408 = vmatprep.subr.mxu0 0.0
    %409 = vmatpush1.msra.mxu0 0.0
    %410 = vmatprep.subr.mxu0 0.0
    %411 = vmatpush1.msra.mxu0 0.0
    %412 = vmatprep.subr.mxu0 0.0
    %413 = vmatpush1.msra.mxu0 0.0
    %414 = vmatprep.subr.mxu0 0.0
    %415 = vmatpush1.msra.mxu0 0.0
    %416 = vmatprep.subr.mxu0 0.0
    %417 = vmatpush1.msra.mxu0 0.0
    %418 = vmatprep.subr.mxu0 0.0
    %419 = vmatpush1.msra.mxu0 0.0
    %420 = vmatprep.subr.mxu0 0.0
    %421 = vmatpush1.msra.mxu0 0.0
    %422 = vmatprep.subr.mxu0 0.0
    %423 = vmatpush1.msra.mxu0 0.0
    %424 = vmatprep.mubr.f32.mxu0 0.0
    %425 = vmatmul.mubr.f32.gmra.mrb[0].mxu0 %v349
    %v426 = vpop.f32.mrb[0].mxu0
    %v427 = vadd.f32 %v346, %v426
    %v428 = vpop.f32.mrb[0].mxu0
    %429 = vmatprep.mubr.f32.mxu0 0.0
    %430 = vmatmul.mubr.f32.gmra.mrb[0].mxu0 %v352
    %v431 = vpop.f32.mrb[0].mxu0
    %v432 = vadd.f32 %v346, %v431
    %v433 = vpop.f32.mrb[0].mxu0
    %434 = vmatprep.mubr.f32.mxu0 0.0
    %435 = vmatmul.mubr.f32.gmra.mrb[0].mxu0 %v355
    %v436 = vpop.f32.mrb[0].mxu0
    %v437 = vadd.f32 %v346, %v436
    %v438 = vpop.f32.mrb[0].mxu0
    %439 = vmatprep.mubr.f32.mxu0 0.0
    %440 = vmatmul.mubr.f32.gmra.mrb[0].mxu0 %v358
    %v441 = vpop.f32.mrb[0].mxu0
    %v442 = vadd.f32 %v346, %v441
    %v443 = vpop.f32.mrb[0].mxu0
    %444 = vdwg.mxu0
    %v445 = vmax.f32 %v427, 0.0
    %v446 = vmax.f32 %v432, 0.0
    %v447 = vmax.f32 %v437, 0.0
    %v448 = vmax.f32 %v442, 0.0
    %v449 = vld [vmem:[#allocation2 + $0xb2] ss:$0 sm:$0xff]
    %v450 = vmul.f32 %v445, %v449
    %v451 = vmul.f32 %v446, %v449
    %v452 = vmul.f32 %v447, %v449
    %v453 = vmul.f32 %v448, %v449
    %vm454 = vcmask 261120
    %v455 = vsel %vm454, %v450, 0.0
    %456 = vadd.xlane.f32.xlu0 %v455
    %v457 = vpop.xlane.xlu0 %456
    %v458 = vsel %vm454, %v451, 0.0
    %459 = vadd.xlane.f32.xlu0 %v458
    %v460 = vpop.xlane.xlu0 %459
    %v461 = vsel %vm454, %v452, 0.0
    %462 = vadd.xlane.f32.xlu0 %v461
    %v463 = vpop.xlane.xlu0 %462
    %v464 = vsel %vm454, %v453, 0.0
    %465 = vadd.xlane.f32.xlu0 %v464
    %v466 = vpop.xlane.xlu0 %465
    %v467 = vld [vmem:[#allocation2 + $0xb3] ss:$0 sm:$0xff]
    %v468 = vadd.f32 %v457, %v467
    %v469 = vadd.f32 %v460, %v467
    %v470 = vadd.f32 %v463, %v467
    %v471 = vadd.f32 %v466, %v467
    %vm472 = vcmask 7168
    %473 = vst.msk [vmem:[%s2] sm:$0xff] %vm472, %v468
    %474 = vst.msk [vmem:[%s2 + $0x8] sm:$0xff] %vm472, %v469
    %475 = vst.msk [vmem:[%s2 + $0x10] sm:$0xff] %vm472, %v470
    %476 = vst.msk [vmem:[%s2 + $0x18] sm:$0xff] %vm472, %v471
    // Predicated region
    $region14: #{lstm_cnn_forward.1} parent=1 // pred_check
      _
    $region15: #{lstm_cnn_forward.1} parent=1 // pred_check_branch
      %478 = sbr.rel (0) target = $region17
    $region16: #{lstm_cnn_forward.1} parent=1 // pred_region
      _
    $region17: #{lstm_cnn_forward.1} parent=1 // pred_fallthru
      _
    // Predicated region
    $region18: #{lstm_cnn_forward.1} parent=1 // pred_check
      _
    $region19: #{lstm_cnn_forward.1} parent=1 // pred_check_branch
      %480 = sbr.rel (0) target = $region21
    $region20: #{lstm_cnn_forward.1} parent=1 // pred_region
      _
    $region21: #{lstm_cnn_forward.1} parent=1 // pred_fallthru
      _
    %481 = vsyncpa [#allocation3], 1

</llo_original>
